<compile_context>
chip_gen: v7x
topology: tpu7x:2x2x1
jax: 0.10.0
libtpu: 0.0.40
codegen_flags: <defaults>
</compile_context>

<pallas_src>
import jax
import jax.numpy as jnp
from jax.experimental import pallas as pl
from jax.experimental.pallas import tpu as pltpu


def linear_model_kernel(x_ref, wf_ref, bf_ref, out_ref, sum_ref):
    """Grid = (batch_blocks, time_blocks); time axis is the reduction.

    x_ref  : (Bt, Tt, D)  feature chunk (bf16 or f32) for this grid step
    wf_ref : (D, C)       fused weight  (W1 @ W2) / T   (x @ W layout)
    bf_ref : (1, C)       fused bias    b1 @ W2 + b2
    out_ref: (Bt, C)      f32 logits
    sum_ref: (Bt, D) f32  running sum of tanh(x) over time (VMEM scratch)
    """
    t = pl.program_id(1)

    @pl.when(t == 0)
    def _():
        sum_ref[...] = jnp.zeros_like(sum_ref)

    # tanh on the EUP in f32, then stream-reduce this time chunk.
    h = jnp.tanh(x_ref[...].astype(jnp.float32))          # (Bt, Tt, D)
    sum_ref[...] += jnp.sum(h, axis=1)                    # (Bt, D)

    @pl.when(t == pl.num_programs(1) - 1)
    def _():
        out = jnp.dot(sum_ref[...], wf_ref[...],
                      preferred_element_type=jnp.float32) + bf_ref[...]
        out_ref[...] = out.astype(out_ref.dtype)


def _largest_aligned_divisor(dim, align, cap):
    """Largest t <= cap with dim % t == 0 and t % align == 0, else None."""
    cap = min(cap, dim)
    t = (cap // align) * align
    while t >= align:
        if dim % t == 0:
            return t
        t -= align
    return None


def _pick_block_b(B, rows_cap):
    if B <= 8:
        return B
    # Prefer >= 2 batch blocks (keeps both v7x TensorCores busy via the
    # "parallel" axis) and a multiple of 8 (output sublane rule), bounded by
    # the VMEM row budget.
    cap = max(8, min(rows_cap, B // 2))
    b = _largest_aligned_divisor(B, 8, cap)
    return b if b is not None else B   # full batch block (dim-exempt) fallback


def _pick_block_t(T, align, cap):
    if T <= cap:
        return T
    t = _largest_aligned_divisor(T, align, cap)
    return t if t is not None else T   # full-T fallback (correct, maybe big)


def linear_model_forward(features, w1, b1, w2, b2, *,
                         stream_dtype=jnp.bfloat16,
                         block_b=None, block_t=None):
    """features: (B, T, D).
    w1: (D, D), b1: (D,), w2: (D, C), b2: (C,)  -- weights in x @ W layout."""
    B, T, D = features.shape
    C = w2.shape[1]

    # Host-side fusion of the two linear layers + the 1/T mean scale.
    hp = jax.lax.Precision.HIGHEST
    wf = (jnp.dot(w1, w2, precision=hp,
                  preferred_element_type=jnp.float32) * (1.0 / T))         # (D, C)
    bf = (jnp.dot(b1.reshape(1, D), w2, precision=hp,
                  preferred_element_type=jnp.float32)
          + b2.reshape(1, C))                                              # (1, C)

    # Stream features at the requested dtype (bf16 halves HBM bytes).
    x = features if features.dtype == stream_dtype else features.astype(stream_dtype)
    itemsize = jnp.dtype(stream_dtype).itemsize
    t_align = 16 if itemsize == 2 else 8          # (16,128) rule for bf16 tiles

    # VMEM-budget-derived tiles: double-buffered feature block <= FEAT_BUDGET.
    FEAT_BUDGET = 16 * 1024 * 1024
    min_t = min(T, t_align)
    rows_cap = max(8, FEAT_BUDGET // (2 * min_t * D * itemsize))
    if block_b is None:
        block_b = _pick_block_b(B, rows_cap)
    if block_t is None:
        t_cap = max(t_align, FEAT_BUDGET // (2 * block_b * D * itemsize))
        block_t = _pick_block_t(T, t_align, t_cap)
    assert B % block_b == 0, (B, block_b)
    assert T % block_t == 0, (T, block_t)

    # Estimated VMEM use -> explicit scoped-VMEM limit (v5e default is 16 MiB).
    est_vmem = (2 * block_b * block_t * D * itemsize   # x double buffer
                + 2 * (D * C + C) * 4                  # wf, bf (double-buffered)
                + 2 * block_b * C * 4                  # out double buffer
                + block_b * D * 4)                     # running-sum scratch
    vmem_limit = int(min(48 * 1024 * 1024,
                         max(32 * 1024 * 1024, est_vmem * 5 // 4)))

    cost = pl.CostEstimate(
        flops=int(B * T * D + 2 * B * D * C + B * C),
        transcendentals=int(B * T * D),
        bytes_accessed=int(B * T * D * itemsize + (D * C + C + B * C) * 4))

    grid = (B // block_b, T // block_t)
    return pl.pallas_call(
        linear_model_kernel,
        out_shape=jax.ShapeDtypeStruct((B, C), jnp.float32),
        grid_spec=pltpu.PrefetchScalarGridSpec(
            num_scalar_prefetch=0,
            grid=grid,
            in_specs=[
                pl.BlockSpec((block_b, block_t, D), lambda b, t: (b, t, 0)),
                pl.BlockSpec((D, C), lambda b, t: (0, 0)),   # resident fused W
                pl.BlockSpec((1, C), lambda b, t: (0, 0)),   # resident fused b
            ],
            out_specs=pl.BlockSpec((block_b, C), lambda b, t: (b, 0)),
            scratch_shapes=[pltpu.VMEM((block_b, D), jnp.float32)],
        ),
        compiler_params=pltpu.CompilerParams(
            dimension_semantics=("parallel", "arbitrary"),
            vmem_limit_bytes=vmem_limit),
        cost_estimate=cost,
    )(x, wf, bf)


def reference_forward(features, w1, b1, w2, b2):
    h = jnp.tanh(features) @ w1 + b1        # Mean.linear(act_fn(feature))
    agg = jnp.mean(h, axis=1)               # mean over (full, padded) time
    return agg @ w2 + b2                    # final classifier


if __name__ == "__main__":
    # Small shapes consistent with the module: batch=2, seq=8, input_dim=32, classes=2.
    B, T, D, C = 2, 8, 32, 2
    key = jax.random.PRNGKey(0)
    k_x, k_w1, k_b1, k_w2, k_b2 = jax.random.split(key, 5)

    features = jax.random.normal(k_x, (B, T, D), dtype=jnp.float32)

    # Deterministic nn.Linear-style init, weights stored pre-transposed (x @ W).
    bound = 1.0 / jnp.sqrt(D)
    w1 = jax.random.uniform(k_w1, (D, D), jnp.float32, -bound, bound)
    b1 = jax.random.uniform(k_b1, (D,), jnp.float32, -bound, bound)
    w2 = jax.random.uniform(k_w2, (D, C), jnp.float32, -bound, bound)
    b2 = jax.random.uniform(k_b2, (C,), jnp.float32, -bound, bound)

    out = linear_model_forward(features, w1, b1, w2, b2)   # bf16 streaming
    out = jax.block_until_ready(out)
    assert out.shape == (B, C), out.shape

    # Tight check vs a reference fed the same bf16-rounded features.
    ref_stream = reference_forward(
        features.astype(jnp.bfloat16).astype(jnp.float32), w1, b1, w2, b2)
    assert jnp.allclose(out, ref_stream, atol=1e-4, rtol=1e-4), (out, ref_stream)

    # Loose check vs the pure-f32 module semantics (bf16 streaming drift only).
    ref_f32 = reference_forward(features, w1, b1, w2, b2)
    assert jnp.allclose(out, ref_f32, atol=5e-2, rtol=5e-2), (out, ref_f32)

    print("KERNEL_OK")
</pallas_src>

<mosaic_0001>
module attributes {stable_mosaic.version = 11 : i64} {
  func.func @linear_model_kernel(%arg0: i32, %arg1: i32, %arg2: memref<2x8x32xbf16, #tpu.memory_space<vmem>>, %arg3: memref<32x2xf32, #tpu.memory_space<vmem>>, %arg4: memref<1x2xf32, #tpu.memory_space<vmem>>, %arg5: memref<2x2xf32, #tpu.memory_space<vmem>>, %arg6: memref<2x32xf32, #tpu.memory_space<vmem>>) attributes {dimension_semantics = [#tpu.dimension_semantics<parallel>, #tpu.dimension_semantics<arbitrary>], iteration_bounds = array<i64: 1, 1>, scalar_prefetch = 0 : i64, scratch_operands = 1 : i64, tpu.core_type = #tpu.core_type<tc>, window_params = [{transform_indices = @transform_0, window_bounds = array<i64: 2, 8, 32>}, {pipeline_mode = #tpu.pipeline_mode<synchronous>, transform_indices = @transform_1, window_bounds = array<i64: 32, 2>}, {pipeline_mode = #tpu.pipeline_mode<synchronous>, transform_indices = @transform_2, window_bounds = array<i64: 1, 2>}, {transform_indices = @transform_3, window_bounds = array<i64: 2, 2>}]} {
    %c0_i32 = arith.constant 0 : i32
    %0 = arith.cmpi eq, %arg1, %c0_i32 : i32
    %1 = arith.extui %0 : i1 to i32
    %c0_i32_0 = arith.constant 0 : i32
    %2 = arith.cmpi ne, %1, %c0_i32_0 : i32
    scf.if %2 {
      %cst_9 = arith.constant 0.000000e+00 : f32
      %13 = vector.broadcast %cst_9 : f32 to vector<2x32xf32>
      %c0_10 = arith.constant 0 : index
      %c0_11 = arith.constant 0 : index
      %14 = vector.load %arg6[%c0_10, %c0_11] : memref<2x32xf32, #tpu.memory_space<vmem>>, vector<2x32xf32>
      tpu.vector_store %arg6[%c0_10, %c0_11], %13 {strides = array<i32>} : memref<2x32xf32, #tpu.memory_space<vmem>>, vector<2x32xf32>,
    } else {
    }
    %c0 = arith.constant 0 : index
    %c0_1 = arith.constant 0 : index
    %c0_2 = arith.constant 0 : index
    %3 = vector.load %arg2[%c0, %c0_1, %c0_2] : memref<2x8x32xbf16, #tpu.memory_space<vmem>>, vector<2x8x32xbf16>
    %4 = arith.extf %3 : vector<2x8x32xbf16> to vector<2x8x32xf32>
    %5 = math.tanh %4 : vector<2x8x32xf32>
    %c0_3 = arith.constant 0 : index
    %c0_4 = arith.constant 0 : index
    %6 = vector.load %arg6[%c0_3, %c0_4] : memref<2x32xf32, #tpu.memory_space<vmem>>, vector<2x32xf32>
    %cst = arith.constant dense<0.000000e+00> : vector<2x32xf32>
    %7 = vector.multi_reduction <add>, %5, %cst [1] : vector<2x8x32xf32> to vector<2x32xf32>
    %8 = arith.addf %6, %7 : vector<2x32xf32>
    %c0_5 = arith.constant 0 : index
    %c0_6 = arith.constant 0 : index
    %9 = vector.load %arg6[%c0_5, %c0_6] : memref<2x32xf32, #tpu.memory_space<vmem>>, vector<2x32xf32>
    tpu.vector_store %arg6[%c0_5, %c0_6], %8 {strides = array<i32>} : memref<2x32xf32, #tpu.memory_space<vmem>>, vector<2x32xf32>,
    %c0_i32_7 = arith.constant 0 : i32
    %10 = arith.cmpi eq, %arg1, %c0_i32_7 : i32
    %11 = arith.extui %10 : i1 to i32
    %c0_i32_8 = arith.constant 0 : i32
    %12 = arith.cmpi ne, %11, %c0_i32_8 : i32
    scf.if %12 {
      %c0_9 = arith.constant 0 : index
      %c0_10 = arith.constant 0 : index
      %13 = vector.load %arg6[%c0_9, %c0_10] : memref<2x32xf32, #tpu.memory_space<vmem>>, vector<2x32xf32>
      %c0_11 = arith.constant 0 : index
      %c0_12 = arith.constant 0 : index
      %14 = vector.load %arg3[%c0_11, %c0_12] : memref<32x2xf32, #tpu.memory_space<vmem>>, vector<32x2xf32>
      %cst_13 = arith.constant dense<0.000000e+00> : vector<2x2xf32>
      %15 = tpu.matmul %13, %14, %cst_13 {dimension_numbers = #tpu.dot_dimension_numbers<[1], [0], [0], [1], [0, 0, 1, 1], [], []>} : vector<2x32xf32>, vector<32x2xf32>, vector<2x2xf32> -> vector<2x2xf32>
      %c0_14 = arith.constant 0 : index
      %c0_15 = arith.constant 0 : index
      %16 = vector.load %arg4[%c0_14, %c0_15] : memref<1x2xf32, #tpu.memory_space<vmem>>, vector<1x2xf32>
      %17 = vector.broadcast %16 : vector<1x2xf32> to vector<2x2xf32>
      %18 = arith.addf %15, %17 : vector<2x2xf32>
      %c0_16 = arith.constant 0 : index
      %c0_17 = arith.constant 0 : index
      %19 = vector.load %arg5[%c0_16, %c0_17] : memref<2x2xf32, #tpu.memory_space<vmem>>, vector<2x2xf32>
      tpu.vector_store %arg5[%c0_16, %c0_17], %18 {strides = array<i32>} : memref<2x2xf32, #tpu.memory_space<vmem>>, vector<2x2xf32>,
    } else {
    }
    return
  }
  func.func @transform_0(%arg0: i32, %arg1: i32) -> (i32, i32, i32) {
    %c0_i32 = arith.constant 0 : i32
    %c0_i32_0 = arith.constant 0 : i32
    return %arg0, %arg1, %c0_i32 : i32, i32, i32
  }
  func.func @transform_1(%arg0: i32, %arg1: i32) -> (i32, i32) {
    %c0_i32 = arith.constant 0 : i32
    %c0_i32_0 = arith.constant 0 : i32
    %c0_i32_1 = arith.constant 0 : i32
    return %c0_i32, %c0_i32_0 : i32, i32
  }
  func.func @transform_2(%arg0: i32, %arg1: i32) -> (i32, i32) {
    %c0_i32 = arith.constant 0 : i32
    %c0_i32_0 = arith.constant 0 : i32
    %c0_i32_1 = arith.constant 0 : i32
    return %c0_i32, %c0_i32_0 : i32, i32
  }
  func.func @transform_3(%arg0: i32, %arg1: i32) -> (i32, i32) {
    %c0_i32 = arith.constant 0 : i32
    %c0_i32_0 = arith.constant 0 : i32
    return %arg0, %c0_i32 : i32, i32
  }
}

</mosaic_0001>

<llo_original>
// kernel: tpu_custom_call.1
$region0: #{tpu_custom_call.1}
  #allocation0 [shape = 'u32[]', space=smem, size = 0x4, offset = 0x4, fixed_abs, tag = 'smem constant byte address 0x4 - core index']
  #allocation1 [shape = 'u32[144,128]{1,0:T(1,128)}', space=vmem, size = 0x12000, scoped, tag = 'internal scratch']
  #allocation2 [shape = 'f32[2,32]{1,0:T(2,128)}', space=vmem, size = 0x400, scoped, tag = 'scratch operand']
  %s0 = inlined_call_operand.vmem [shape: bf16[2,8,32], index: 0, kind: input, shape index: {}]
  %s1 = inlined_call_operand.vmem [shape: f32[32,2], index: 1, kind: input, shape index: {}]
  %s2 = inlined_call_operand.vmem [shape: f32[1,2], index: 2, kind: input, shape index: {}]
  %s3 = inlined_call_operand.hbm [shape: f32[2,2], index: 3, kind: output, shape index: {}]
  %s4 = sld [smem:[#allocation0]]
  $region30: #{tpu_custom_call.1} parent=0
    _
  %s6 = ssub.s32 1, %s4
  %s7 = scalar_select 0, %s6, %s4
  $region1: #{tpu_custom_call.1} parent=0
    #allocation3 [shape = 'u8[1024]{0}', space=vmem, size = 0x400, scoped, tag = 'output window, operand 0, single buffered']
    #allocation4 [shape = 's32[1]{0}', space=sflag, size = 0x4, scoped, tag = 'scoped memory for tpu_custom_call.1']
    %8 = vsyncpa [#allocation4], 0
    // Predicated region
    $region2: #{tpu_custom_call.1} parent=1 // pred_check
      _
    $region3: #{tpu_custom_call.1} parent=1 // pred_check_branch
      %10 = sbr.rel (0) target = $region5
    $region4: #{tpu_custom_call.1} parent=1 // pred_region
      _
    $region5: #{tpu_custom_call.1} parent=1 // pred_fallthru
      _
    // Predicated region
    $region6: #{tpu_custom_call.1} parent=1 // pred_check
      _
    $region7: #{tpu_custom_call.1} parent=1 // pred_check_branch
      %12 = sbr.rel (0) target = $region9
    $region8: #{tpu_custom_call.1} parent=1 // pred_region
      _
    $region9: #{tpu_custom_call.1} parent=1 // pred_fallthru
      _
    // Predicated region
    $region10: #{tpu_custom_call.1} parent=1 // pred_check
      _
    $region11: #{tpu_custom_call.1} parent=1 // pred_check_branch
      %14 = sbr.rel (0) target = $region13
    $region12: #{tpu_custom_call.1} parent=1 // pred_region
      _
    $region13: #{tpu_custom_call.1} parent=1 // pred_fallthru
      _
    %p15 = scmp.eq.s32.totalorder 0, 0
    // Predicated region
    $region14: #{tpu_custom_call.1} parent=1 // pred_check
      %p16 = pneg %p15
    $region15: #{tpu_custom_call.1} parent=1 // pred_check_branch
      %18 = sbr.rel (%p16) target = $region17
    $region16: #{tpu_custom_call.1} parent=1 // pred_region
      %vm19 = vcmask 254976
      %20 = vst.msk [vmem:[#allocation2] sm:$0x3] %vm19, 0.0
    $region17: #{tpu_custom_call.1} parent=1 // pred_fallthru
      _
    %v21 = vld [vmem:[%s0] sm:$0xf]
    %v22 = vld [vmem:[%s0 + $0x4] sm:$0xf]
    %v23 = vunpack.c.l.bf16 %v21
    %v24 = vunpack.c.l.bf16 %v22
    %v25 = vtanh.pop %v23
    %v26 = vtanh.pop %v24
    %v27 = vld [vmem:[#allocation2] sm:$0x3]
    %vm28 = vcmask 261120
    %v29 = vsel %vm28, %v25, 0.0
    %v30 = vrot.slane %v29, 4
    %v31 = vadd.f32 %v29, %v30
    %v32 = vrot.slane %v31, 2
    %v33 = vadd.f32 %v31, %v32
    %v34 = vrot.slane %v33, 1
    %v35 = vadd.f32 %v33, %v34
    %v36 = vsel %vm28, %v26, 0.0
    %v37 = vrot.slane %v36, 4
    %v38 = vadd.f32 %v36, %v37
    %v39 = vrot.slane %v38, 2
    %v40 = vadd.f32 %v38, %v39
    %v41 = vrot.slane %v40, 1
    %v42 = vadd.f32 %v40, %v41
    %vm45 = vcmask 1041409
    %v46 = vsel %vm45, %v42, %v35
    %v48 = vadd.f32 %v27, %v46
    %vm49 = vcmask 254976
    %50 = vst.msk [vmem:[#allocation2] sm:$0x3] %vm49, %v48
    // Predicated region
    $region18: #{tpu_custom_call.1} parent=1 // pred_check
      %p51 = pneg %p15
    $region19: #{tpu_custom_call.1} parent=1 // pred_check_branch
      %53 = sbr.rel (%p51) target = $region21
    $region20: #{tpu_custom_call.1} parent=1 // pred_region
      %v54 = vld [vmem:[#allocation2] sm:$0x3]
      %v55 = vld [vmem:[%s1] sm:$0xff]
      %v56 = vld [vmem:[%s1 + $0x8] sm:$0xff]
      %v57 = vld [vmem:[%s1 + $0x10] sm:$0xff]
      %v58 = vld [vmem:[%s1 + $0x18] sm:$0xff]
      %v59 = vld [vmem:[%s2] sm:$0x1]
      %v61 = vlaneseq
      %v62 = vshrl.u32 %v61, 7
      %v63 = vsub.s32 0, %v62
      %v64 = vrot.slane %v59, %v63
      %v67 = vsel %vm28, %v54, 0
      %69 = vmatprep.subr.mxu0 0.0
      %70 = vmatpush1.msra.mxu0 %v55
      %71 = vmatprep.subr.mxu0 0.0
      %72 = vmatpush1.msra.mxu0 %v56
      %73 = vmatprep.subr.mxu0 0.0
      %74 = vmatpush1.msra.mxu0 %v57
      %75 = vmatprep.subr.mxu0 0.0
      %76 = vmatpush1.msra.mxu0 %v58
      %77 = vmatprep.subr.mxu0 0.0
      %78 = vmatpush1.msra.mxu0 0.0
      %79 = vmatprep.subr.mxu0 0.0
      %80 = vmatpush1.msra.mxu0 0.0
      %81 = vmatprep.subr.mxu0 0.0
      %82 = vmatpush1.msra.mxu0 0.0
      %83 = vmatprep.subr.mxu0 0.0
      %84 = vmatpush1.msra.mxu0 0.0
      %85 = vmatprep.subr.mxu0 0.0
      %86 = vmatpush1.msra.mxu0 0.0
      %87 = vmatprep.subr.mxu0 0.0
      %88 = vmatpush1.msra.mxu0 0.0
      %89 = vmatprep.subr.mxu0 0.0
      %90 = vmatpush1.msra.mxu0 0.0
      %91 = vmatprep.subr.mxu0 0.0
      %92 = vmatpush1.msra.mxu0 0.0
      %93 = vmatprep.subr.mxu0 0.0
      %94 = vmatpush1.msra.mxu0 0.0
      %95 = vmatprep.subr.mxu0 0.0
      %96 = vmatpush1.msra.mxu0 0.0
      %97 = vmatprep.subr.mxu0 0.0
      %98 = vmatpush1.msra.mxu0 0.0
      %99 = vmatprep.subr.mxu0 0.0
      %100 = vmatpush1.msra.mxu0 0.0
      %101 = vmatprep.subr.mxu0 0.0
      %102 = vmatpush1.msra.mxu0 0.0
      %103 = vmatprep.subr.mxu0 0.0
      %104 = vmatpush1.msra.mxu0 0.0
      %105 = vmatprep.subr.mxu0 0.0
      %106 = vmatpush1.msra.mxu0 0.0
      %107 = vmatprep.subr.mxu0 0.0
      %108 = vmatpush1.msra.mxu0 0.0
      %109 = vmatprep.subr.mxu0 0.0
      %110 = vmatpush1.msra.mxu0 0.0
      %111 = vmatprep.subr.mxu0 0.0
      %112 = vmatpush1.msra.mxu0 0.0
      %113 = vmatprep.subr.mxu0 0.0
      %114 = vmatpush1.msra.mxu0 0.0
      %115 = vmatprep.subr.mxu0 0.0
      %116 = vmatpush1.msra.mxu0 0.0
      %117 = vmatprep.subr.mxu0 0.0
      %118 = vmatpush1.msra.mxu0 0.0
      %119 = vmatprep.subr.mxu0 0.0
      %120 = vmatpush1.msra.mxu0 0.0
      %121 = vmatprep.subr.mxu0 0.0
      %122 = vmatpush1.msra.mxu0 0.0
      %123 = vmatprep.subr.mxu0 0.0
      %124 = vmatpush1.msra.mxu0 0.0
      %125 = vmatprep.subr.mxu0 0.0
      %126 = vmatpush1.msra.mxu0 0.0
      %127 = vmatprep.subr.mxu0 0.0
      %128 = vmatpush1.msra.mxu0 0.0
      %129 = vmatprep.subr.mxu0 0.0
      %130 = vmatpush1.msra.mxu0 0.0
      %131 = vmatprep.subr.mxu0 0.0
      %132 = vmatpush1.msra.mxu0 0.0
      %133 = vmatprep.mubr.f32.mxu0 0.0
      %134 = vmatmul.mubr.f32.gmra.mrb[0].mxu0 %v67
      %v135 = vpop.f32.mrb[0].mxu0
      %v136 = vadd.f32 %v64, %v135
      %v137 = vpop.f32.mrb[0].mxu0
      %138 = vdwg.mxu0
      %vm139 = vcmask 9216
      %140 = vst.msk [vmem:[#allocation3] sm:$0x3] %vm139, %v136
    $region21: #{tpu_custom_call.1} parent=1 // pred_fallthru
      _
    // Predicated region
    $region22: #{tpu_custom_call.1} parent=1 // pred_check
      _
    $region23: #{tpu_custom_call.1} parent=1 // pred_check_branch
      %142 = sbr.rel (0) target = $region25
    $region24: #{tpu_custom_call.1} parent=1 // pred_region
      %s144 = ssub.s32 32, 32
      %145 = vsyncadd [#allocation4], %s144
      %s147 = sshll.u32 [#allocation3], 4
      %s148 = int_to_ptr.vmem [resolvable:$true] %s147
      %150 = dma.vmem_to_hbm [thread:$0]  %s148, 32, %s3, [#allocation4]
    $region25: #{tpu_custom_call.1} parent=1 // pred_fallthru
      _
    // Predicated region
    $region26: #{tpu_custom_call.1} parent=1 // pred_check
      _
    $region27: #{tpu_custom_call.1} parent=1 // pred_check_branch
      %152 = sbr.rel (0) target = $region29
    $region28: #{tpu_custom_call.1} parent=1 // pred_region
      %153 = dma.done [#allocation4], 32
    $region29: #{tpu_custom_call.1} parent=1 // pred_fallthru
      _
    %154 = vsyncpa [#allocation4], 1

</llo_original>
